<compile_context>
chip_gen: v5e
topology: v5e:2x2
jax: 0.10.0
libtpu: 0.0.40
codegen_flags: <defaults>
</compile_context>

<pallas_src>
import functools
import math

import jax
import jax.numpy as jnp
from jax import lax
from jax.experimental import pallas as pl
from jax.experimental.pallas import tpu as pltpu


# ----------------------------------------------------------------------------
# tiling helper
# ----------------------------------------------------------------------------
def _pick_tile(dim, cap, align):
    """Largest tile <= cap that divides `dim` and is a multiple of `align`;
    falls back to the full dim (full-extent blocks satisfy the (8,128) rule)."""
    if dim <= cap:
        return dim
    t = (cap // align) * align
    while t >= align:
        if dim % t == 0:
            return t
        t -= align
    return dim


_MOSAIC_VMEM_LIMIT = 32 * 1024 * 1024  # explicit; safe on v5e/v6e/v7x


# ----------------------------------------------------------------------------
# dense (tiled matmul + bias + optional activation), bf16 in / f32 acc
# ----------------------------------------------------------------------------
def _dense_kernel(x_ref, w_ref, b_ref, o_ref, acc_ref, *, activation):
    k = pl.program_id(2)

    @pl.when(k == 0)
    def _():
        acc_ref[...] = jnp.zeros_like(acc_ref)

    acc_ref[...] += jnp.dot(x_ref[...], w_ref[...],
                            preferred_element_type=jnp.float32)

    @pl.when(k == pl.num_programs(2) - 1)
    def _():
        y = acc_ref[...] + b_ref[...].astype(jnp.float32)
        if activation == "gelu":      # exact (erf) gelu, as in BERT
            y = 0.5 * y * (1.0 + lax.erf(y * jnp.float32(1.0 / math.sqrt(2.0))))
        elif activation == "tanh":
            y = jnp.tanh(y)
        o_ref[...] = y.astype(o_ref.dtype)


def dense(x, w, b, activation=None, out_dtype=jnp.bfloat16,
          tm_cap=256, tn_cap=256, tk_cap=512):
    """x: (M, K) bf16, w: (K, N) bf16, b: (N,) f32 -> (M, N) out_dtype."""
    M, K = x.shape
    N = w.shape[1]
    tm = _pick_tile(M, tm_cap, 8)
    tn = _pick_tile(N, tn_cap, 128)
    tk = _pick_tile(K, tk_cap, 128)
    grid = (M // tm, N // tn, K // tk)

    return pl.pallas_call(
        functools.partial(_dense_kernel, activation=activation),
        out_shape=jax.ShapeDtypeStruct((M, N), out_dtype),
        grid=grid,
        in_specs=[
            pl.BlockSpec((tm, tk), lambda i, j, k: (i, k)),
            pl.BlockSpec((tk, tn), lambda i, j, k: (k, j)),
            pl.BlockSpec((1, tn), lambda i, j, k: (0, j)),
        ],
        out_specs=pl.BlockSpec((tm, tn), lambda i, j, k: (i, j)),
        scratch_shapes=[pltpu.VMEM((tm, tn), jnp.float32)],
        compiler_params=pltpu.CompilerParams(
            dimension_semantics=("parallel", "parallel", "arbitrary"),
            vmem_limit_bytes=_MOSAIC_VMEM_LIMIT),
    )(x, w, b.reshape(1, N))


# ----------------------------------------------------------------------------
# LayerNorm (row-tiled), with optional fused residual add
# ----------------------------------------------------------------------------
def _ln_kernel(x_ref, g_ref, b_ref, o_ref, *, eps):
    x = x_ref[...].astype(jnp.float32)
    mean = jnp.mean(x, axis=-1, keepdims=True)
    var = jnp.mean(jnp.square(x - mean), axis=-1, keepdims=True)
    inv = lax.rsqrt(var + eps)
    o_ref[...] = ((x - mean) * inv * g_ref[...] + b_ref[...]).astype(o_ref.dtype)


def _ln_residual_kernel(x_ref, r_ref, g_ref, b_ref, o_ref, *, eps):
    x = x_ref[...].astype(jnp.float32) + r_ref[...].astype(jnp.float32)
    mean = jnp.mean(x, axis=-1, keepdims=True)
    var = jnp.mean(jnp.square(x - mean), axis=-1, keepdims=True)
    inv = lax.rsqrt(var + eps)
    o_ref[...] = ((x - mean) * inv * g_ref[...] + b_ref[...]).astype(o_ref.dtype)


def layernorm(x, gamma, beta, residual=None, eps=1e-12,
              out_dtype=jnp.bfloat16, tm_cap=1024):
    """x (M, H); gamma/beta (1, H); optional residual (M, H) fused in."""
    M, H = x.shape
    tm = _pick_tile(M, tm_cap, 8)
    row_spec = pl.BlockSpec((tm, H), lambda i: (i, 0))
    vec_spec = pl.BlockSpec((1, H), lambda i: (0, 0))
    if residual is None:
        kernel = functools.partial(_ln_kernel, eps=eps)
        in_specs = [row_spec, vec_spec, vec_spec]
        args = (x, gamma, beta)
    else:
        kernel = functools.partial(_ln_residual_kernel, eps=eps)
        in_specs = [row_spec, row_spec, vec_spec, vec_spec]
        args = (x, residual, gamma, beta)
    return pl.pallas_call(
        kernel,
        out_shape=jax.ShapeDtypeStruct((M, H), out_dtype),
        grid=(M // tm,),
        in_specs=in_specs,
        out_specs=row_spec,
        compiler_params=pltpu.CompilerParams(
            dimension_semantics=("parallel",),
            vmem_limit_bytes=_MOSAIC_VMEM_LIMIT),
    )(*args)


# ----------------------------------------------------------------------------
# multi-head self-attention: lane-dense (B, S, 3H) in -> (B, S, H) out
# ----------------------------------------------------------------------------
def _attention_kernel(qkv_ref, mask_ref, o_ref, *, num_heads, head_dim, scale):
    H = num_heads * head_dim
    qkv = qkv_ref[0]                             # (S, 3H) bf16, lane-dense
    mask = mask_ref[0]                           # (1, S) additive key mask, f32
    # Fold the 1/sqrt(d) scale into Q once for all heads (bf16 VPU multiply
    # over (S, H)), instead of an f32 multiply over every (S, S) score tile.
    q_all = qkv[:, :H] * jnp.asarray(scale, dtype=qkv.dtype)
    k_all = qkv[:, H:2 * H]
    v_all = qkv[:, 2 * H:]
    ctx_heads = []
    for h in range(num_heads):                   # static unroll over heads
        lo = h * head_dim
        hi = lo + head_dim
        q = q_all[:, lo:hi]                              # (S, Dh)
        k = k_all[:, lo:hi]                              # (S, Dh)
        v = v_all[:, lo:hi]                              # (S, Dh)
        # q @ k^T via contracting dim 1 of both (no explicit transpose)
        scores = lax.dot_general(
            q, k, (((1,), (1,)), ((), ())),
            preferred_element_type=jnp.float32)           # (S, S) f32
        scores = scores + mask                            # broadcast over rows
        m = jnp.max(scores, axis=-1, keepdims=True)
        p = jnp.exp(scores - m)
        denom = jnp.sum(p, axis=-1, keepdims=True)
        probs = p * pl.reciprocal(denom, approx=True)     # EUP, frees VALU
        ctx_heads.append(
            jnp.dot(probs.astype(v.dtype), v,
                    preferred_element_type=jnp.float32))  # (S, Dh) f32
    # fold heads back into a single lane-dense (S, H) store
    o_ref[0] = jnp.concatenate(ctx_heads, axis=-1).astype(o_ref.dtype)


def multihead_attention(qkv, mask_add, num_heads):
    """qkv: (B, S, 3H) bf16; mask_add: (B, 1, S) additive f32 mask."""
    B, S, H3 = qkv.shape
    H = H3 // 3
    head_dim = H // num_heads
    scale = 1.0 / math.sqrt(head_dim)
    # TODO(synk): for long sequences, add a kv-tile grid axis with online
    # softmax (flash-style) to bound per-step VMEM and enable finer sharding.
    return pl.pallas_call(
        functools.partial(_attention_kernel, num_heads=num_heads,
                          head_dim=head_dim, scale=scale),
        out_shape=jax.ShapeDtypeStruct((B, S, H), jnp.bfloat16),
        grid=(B,),
        in_specs=[
            pl.BlockSpec((1, S, H3), lambda b: (b, 0, 0)),
            pl.BlockSpec((1, 1, S), lambda b: (b, 0, 0)),
        ],
        out_specs=pl.BlockSpec((1, S, H), lambda b: (b, 0, 0)),
        compiler_params=pltpu.CompilerParams(
            dimension_semantics=("parallel",),
            vmem_limit_bytes=_MOSAIC_VMEM_LIMIT),
    )(qkv, mask_add)


# ----------------------------------------------------------------------------
# BERT model (plain-JAX glue around the Pallas kernels)
# ----------------------------------------------------------------------------
def init_params(key, cfg):
    H, I, L = cfg["hidden"], cfg["intermediate"], cfg["num_layers"]
    keys = iter(jax.random.split(key, 16 + 16 * L))

    def w(shape, dtype=jnp.bfloat16):   # matmul weights stored bf16 (MXU path)
        return (jax.random.normal(next(keys), shape, jnp.float32)
                * 0.02).astype(dtype)

    params = {
        "word_emb": w((cfg["vocab"], H), jnp.float32),
        "pos_emb": w((cfg["max_pos"], H), jnp.float32),
        "type_emb": w((cfg["type_vocab"], H), jnp.float32),
        "emb_ln_g": jnp.ones((1, H), jnp.float32),
        "emb_ln_b": jnp.zeros((1, H), jnp.float32),
        "pool_w": w((H, H)),
        "pool_b": jnp.zeros((H,), jnp.float32),
        "cls_w": w((H, cfg["num_labels"]), jnp.float32),
        "cls_b": jnp.zeros((cfg["num_labels"],), jnp.float32),
        "layers": [],
    }
    for _ in range(L):
        params["layers"].append({
            # fused QKV projection: single (H, 3H) weight
            "qkv_w": w((H, 3 * H)), "qkv_b": jnp.zeros((3 * H,), jnp.float32),
            "o_w": w((H, H)), "o_b": jnp.zeros((H,), jnp.float32),
            "ln1_g": jnp.ones((1, H), jnp.float32),
            "ln1_b": jnp.zeros((1, H), jnp.float32),
            "i_w": w((H, I)), "i_b": jnp.zeros((I,), jnp.float32),
            "f_w": w((I, H)), "f_b": jnp.zeros((H,), jnp.float32),
            "ln2_g": jnp.ones((1, H), jnp.float32),
            "ln2_b": jnp.zeros((1, H), jnp.float32),
        })
    return params


def bert_layer(hidden, mask_add, p, cfg):
    B, S, H = hidden.shape
    NH = cfg["num_heads"]
    x2 = hidden.reshape(B * S, H)                          # bf16, lane-dense

    # fused QKV projection: one matmul, activation slab read from HBM once
    qkv = dense(x2, p["qkv_w"], p["qkv_b"]).reshape(B, S, 3 * H)

    ctx = multihead_attention(qkv, mask_add, NH)           # (B, S, H) lane-dense
    attn_out = dense(ctx.reshape(B * S, H), p["o_w"], p["o_b"])

    # residual add fused into the LayerNorm kernel
    hidden2 = layernorm(attn_out, p["ln1_g"], p["ln1_b"], residual=x2)

    inter = dense(hidden2, p["i_w"], p["i_b"], activation="gelu")
    ffn_out = dense(inter, p["f_w"], p["f_b"])
    out = layernorm(ffn_out, p["ln2_g"], p["ln2_b"], residual=hidden2)
    return out.reshape(B, S, H)


def bert_sequence_classification(params, input_ids, attention_mask,
                                 token_type_ids, cfg):
    """Mirrors BertSequenceClassification.forward: returns logits (B, num_labels)."""
    B, S = input_ids.shape
    H = cfg["hidden"]

    # --- embeddings ---
    # TODO(synk): embedding row gathers stay in XLA (data-dependent HBM gather
    # has no clean BlockSpec form); the sum + LayerNorm is a Pallas kernel.
    positions = jnp.arange(S, dtype=jnp.int32)
    emb = (jnp.take(params["word_emb"], input_ids, axis=0)
           + jnp.take(params["pos_emb"], positions, axis=0)[None, :, :]
           + jnp.take(params["type_emb"], token_type_ids, axis=0))
    hidden = layernorm(emb.reshape(B * S, H),
                       params["emb_ln_g"], params["emb_ln_b"]).reshape(B, S, H)

    # --- extended additive attention mask, as in HF BERT ---
    mask_add = ((1.0 - attention_mask.astype(jnp.float32)) * -10000.0
                ).reshape(B, 1, S)

    # --- encoder layers ---
    for lp in params["layers"]:
        hidden = bert_layer(hidden, mask_add, lp, cfg)

    # --- pooler (CLS token, dense + tanh) and classifier head ---
    cls = hidden[:, 0, :]                                   # (B, H) bf16
    pooled = dense(cls, params["pool_w"], params["pool_b"],
                   activation="tanh", out_dtype=jnp.float32)
    # classifier: num_labels (=2) output lanes -> leave to XLA instead of a
    # pathological masked-lane-store Pallas kernel (negligible FLOPs).
    logits = pooled @ params["cls_w"] + params["cls_b"]
    return logits


# ----------------------------------------------------------------------------
if __name__ == "__main__":
    cfg = dict(vocab=100, hidden=32, num_heads=4, num_layers=2,
               intermediate=64, max_pos=16, type_vocab=2, num_labels=2)
    B, S = 2, 8

    key = jax.random.PRNGKey(0)
    k_param, k_ids = jax.random.split(key)
    params = init_params(k_param, cfg)

    input_ids = jax.random.randint(k_ids, (B, S), 0, cfg["vocab"], jnp.int32)
    attention_mask = jnp.array(
        [[1, 1, 1, 1, 1, 1, 1, 1],
         [1, 1, 1, 1, 1, 0, 0, 0]], dtype=jnp.int32)
    token_type_ids = jnp.array(
        [[0, 0, 0, 0, 1, 1, 1, 1],
         [0, 0, 0, 1, 1, 1, 1, 1]], dtype=jnp.int32)

    logits = bert_sequence_classification(
        params, input_ids, attention_mask, token_type_ids, cfg)
    logits = jax.block_until_ready(logits)

    assert logits.shape == (B, cfg["num_labels"])
    assert bool(jnp.all(jnp.isfinite(logits)))
    print("KERNEL_OK")
</pallas_src>

<mosaic_0001>
module attributes {stable_mosaic.version = 11 : i64} {
  func.func @_ln_kernel(%arg0: i32, %arg1: memref<16x32xf32, #tpu.memory_space<vmem>>, %arg2: memref<1x32xf32, #tpu.memory_space<vmem>>, %arg3: memref<1x32xf32, #tpu.memory_space<vmem>>, %arg4: memref<16x32xbf16, #tpu.memory_space<vmem>>) attributes {dimension_semantics = [#tpu.dimension_semantics<parallel>], iteration_bounds = array<i64: 1>, scalar_prefetch = 0 : i64, scratch_operands = 0 : i64, tpu.core_type = #tpu.core_type<tc>, window_params = [{transform_indices = @transform_0, window_bounds = array<i64: 16, 32>}, {pipeline_mode = #tpu.pipeline_mode<synchronous>, transform_indices = @transform_1, window_bounds = array<i64: 1, 32>}, {pipeline_mode = #tpu.pipeline_mode<synchronous>, transform_indices = @transform_2, window_bounds = array<i64: 1, 32>}, {transform_indices = @transform_3, window_bounds = array<i64: 16, 32>}]} {
    %c0 = arith.constant 0 : index
    %c0_0 = arith.constant 0 : index
    %0 = vector.load %arg1[%c0, %c0_0] : memref<16x32xf32, #tpu.memory_space<vmem>>, vector<16x32xf32>
    %cst = arith.constant dense<0.000000e+00> : vector<16xf32>
    %1 = vector.multi_reduction <add>, %0, %cst [1] : vector<16x32xf32> to vector<16xf32>
    %2 = vector.shape_cast %1 : vector<16xf32> to vector<16x1xf32>
    %cst_1 = arith.constant 3.200000e+01 : f32
    %3 = vector.broadcast %cst_1 : f32 to vector<16x1xf32>
    %4 = arith.divf %2, %3 : vector<16x1xf32>
    %5 = vector.broadcast %4 : vector<16x1xf32> to vector<16x32xf32>
    %6 = arith.subf %0, %5 : vector<16x32xf32>
    %7 = arith.mulf %6, %6 : vector<16x32xf32>
    %cst_2 = arith.constant dense<0.000000e+00> : vector<16xf32>
    %8 = vector.multi_reduction <add>, %7, %cst_2 [1] : vector<16x32xf32> to vector<16xf32>
    %9 = vector.shape_cast %8 : vector<16xf32> to vector<16x1xf32>
    %cst_3 = arith.constant 3.200000e+01 : f32
    %10 = vector.broadcast %cst_3 : f32 to vector<16x1xf32>
    %11 = arith.divf %9, %10 : vector<16x1xf32>
    %cst_4 = arith.constant 9.99999996E-13 : f32
    %12 = vector.broadcast %cst_4 : f32 to vector<16x1xf32>
    %13 = arith.addf %11, %12 : vector<16x1xf32>
    %14 = math.rsqrt %13 : vector<16x1xf32>
    %15 = vector.broadcast %4 : vector<16x1xf32> to vector<16x32xf32>
    %16 = arith.subf %0, %15 : vector<16x32xf32>
    %17 = vector.broadcast %14 : vector<16x1xf32> to vector<16x32xf32>
    %18 = arith.mulf %16, %17 : vector<16x32xf32>
    %c0_5 = arith.constant 0 : index
    %c0_6 = arith.constant 0 : index
    %19 = vector.load %arg2[%c0_5, %c0_6] : memref<1x32xf32, #tpu.memory_space<vmem>>, vector<1x32xf32>
    %20 = vector.broadcast %19 : vector<1x32xf32> to vector<16x32xf32>
    %21 = arith.mulf %18, %20 : vector<16x32xf32>
    %c0_7 = arith.constant 0 : index
    %c0_8 = arith.constant 0 : index
    %22 = vector.load %arg3[%c0_7, %c0_8] : memref<1x32xf32, #tpu.memory_space<vmem>>, vector<1x32xf32>
    %23 = vector.broadcast %22 : vector<1x32xf32> to vector<16x32xf32>
    %24 = arith.addf %21, %23 : vector<16x32xf32>
    %25 = arith.truncf %24 : vector<16x32xf32> to vector<16x32xbf16>
    %c0_9 = arith.constant 0 : index
    %c0_10 = arith.constant 0 : index
    %26 = vector.load %arg4[%c0_9, %c0_10] : memref<16x32xbf16, #tpu.memory_space<vmem>>, vector<16x32xbf16>
    tpu.vector_store %arg4[%c0_9, %c0_10], %25 {strides = array<i32>} : memref<16x32xbf16, #tpu.memory_space<vmem>>, vector<16x32xbf16>,
    return
  }
  func.func @transform_0(%arg0: i32) -> (i32, i32) {
    %c0_i32 = arith.constant 0 : i32
    %c0_i32_0 = arith.constant 0 : i32
    return %arg0, %c0_i32 : i32, i32
  }
  func.func @transform_1(%arg0: i32) -> (i32, i32) {
    %c0_i32 = arith.constant 0 : i32
    %c0_i32_0 = arith.constant 0 : i32
    %c0_i32_1 = arith.constant 0 : i32
    return %c0_i32, %c0_i32_0 : i32, i32
  }
  func.func @transform_2(%arg0: i32) -> (i32, i32) {
    %c0_i32 = arith.constant 0 : i32
    %c0_i32_0 = arith.constant 0 : i32
    %c0_i32_1 = arith.constant 0 : i32
    return %c0_i32, %c0_i32_0 : i32, i32
  }
  func.func @transform_3(%arg0: i32) -> (i32, i32) {
    %c0_i32 = arith.constant 0 : i32
    %c0_i32_0 = arith.constant 0 : i32
    return %arg0, %c0_i32 : i32, i32
  }
}

</mosaic_0001>

<llo_original>
// kernel: tpu_custom_call.1
$region0: #{tpu_custom_call.1}
  #allocation0 [shape = 'u32[]', space=smem, size = 0x4, offset = 0x4, fixed_abs, tag = 'smem constant byte address 0x4 - core index']
  #allocation1 [shape = 'u32[72,128]{1,0:T(1,128)}', space=vmem, size = 0x9000, scoped, tag = 'internal scratch']
  %s0 = inlined_call_operand.hbm [shape: f32[16,32], index: 0, kind: input, shape index: {}]
  %s1 = inlined_call_operand.hbm [shape: f32[1,32], index: 1, kind: input, shape index: {}]
  %s2 = inlined_call_operand.vmem [shape: f32[1,32], index: 2, kind: input, shape index: {}]
  %s3 = inlined_call_operand.hbm [shape: bf16[16,32], index: 3, kind: output, shape index: {}]
  %s4 = sld [smem:[#allocation0]]
  $region30: #{tpu_custom_call.1} parent=0
    _
  %s6 = ssub.s32 1, %s4
  %s7 = scalar_select 0, %s6, %s4
  $region1: #{tpu_custom_call.1} parent=0
    #allocation2 [shape = 'u8[8192]{0}', space=vmem, size = 0x2000, scoped, tag = 'input window, operand 0, single buffered']
    #allocation3 [shape = 's32[1]{0}', space=sflag, size = 0x4, scoped, tag = 'scoped memory for tpu_custom_call.1']
    #allocation4 [shape = 's32[1]{0}', space=sflag, size = 0x4, scoped, tag = 'scoped memory for tpu_custom_call.1']
    #allocation5 [shape = 'u8[512]{0}', space=vmem, size = 0x400, scoped, tag = 'input window, operand 1, single buffered']
    #allocation6 [shape = 's32[1]{0}', space=sflag, size = 0x4, scoped, tag = 'scoped memory for tpu_custom_call.1']
    #allocation7 [shape = 'u8[4096]{0}', space=vmem, size = 0x1000, scoped, tag = 'output window, operand 0, single buffered']
    %8 = vsyncpa [#allocation3], 0
    %9 = vsyncpa [#allocation6], 0
    %10 = vsyncpa [#allocation4], 0
    // Predicated region
    $region2: #{tpu_custom_call.1} parent=1 // pred_check
      _
    $region3: #{tpu_custom_call.1} parent=1 // pred_check_branch
      %12 = sbr.rel (0) target = $region5
    $region4: #{tpu_custom_call.1} parent=1 // pred_region
      %14 = vsyncadd [#allocation3], 0
      %s15 = sshll.u32 %s0, 4
      %s16 = int_to_ptr.hbm [resolvable:$true] %s15
      %s17 = sshll.u32 [#allocation2], 4
      %s18 = int_to_ptr.vmem [resolvable:$true] %s17
      %23 = dma.hbm_to_vmem [thread:$0]  %s16, 256, %s18, [#allocation3], 128, 128, 8
    $region5: #{tpu_custom_call.1} parent=1 // pred_fallthru
      _
    // Predicated region
    $region6: #{tpu_custom_call.1} parent=1 // pred_check
      _
    $region7: #{tpu_custom_call.1} parent=1 // pred_check_branch
      %25 = sbr.rel (0) target = $region9
    $region8: #{tpu_custom_call.1} parent=1 // pred_region
      %27 = vsyncadd [#allocation6], 0
      %s29 = sshll.u32 %s1, 4
      %s30 = int_to_ptr.hbm [resolvable:$true] %s29
      %s31 = sshll.u32 [#allocation5], 4
      %s32 = int_to_ptr.vmem [resolvable:$true] %s31
      %34 = dma.hbm_to_vmem [thread:$0]  %s30, 16, %s32, [#allocation6]
    $region9: #{tpu_custom_call.1} parent=1 // pred_fallthru
      _
    // Predicated region
    $region10: #{tpu_custom_call.1} parent=1 // pred_check
      _
    $region11: #{tpu_custom_call.1} parent=1 // pred_check_branch
      %36 = sbr.rel (0) target = $region13
    $region12: #{tpu_custom_call.1} parent=1 // pred_region
      _
    $region13: #{tpu_custom_call.1} parent=1 // pred_fallthru
      _
    // Predicated region
    $region14: #{tpu_custom_call.1} parent=1 // pred_check
      _
    $region15: #{tpu_custom_call.1} parent=1 // pred_check_branch
      %38 = sbr.rel (0) target = $region17
    $region16: #{tpu_custom_call.1} parent=1 // pred_region
      %40 = dma.done [#allocation3], 256
    $region17: #{tpu_custom_call.1} parent=1 // pred_fallthru
      _
    // Predicated region
    $region18: #{tpu_custom_call.1} parent=1 // pred_check
      _
    $region19: #{tpu_custom_call.1} parent=1 // pred_check_branch
      %42 = sbr.rel (0) target = $region21
    $region20: #{tpu_custom_call.1} parent=1 // pred_region
      %44 = dma.done [#allocation6], 16
    $region21: #{tpu_custom_call.1} parent=1 // pred_fallthru
      _
    %v45 = vld [vmem:[#allocation2] sm:$0xff]
    %v46 = vld [vmem:[#allocation2 + $0x8] sm:$0xff]
    %vm47 = vcmask 261120
    %v48 = vsel %vm47, %v45, 0.0
    %49 = vadd.xlane.f32.xlu0 %v48
    %v50 = vpop.xlane.xlu0 %49
    %v51 = vsel %vm47, %v46, 0.0
    %52 = vadd.xlane.f32.xlu0 %v51
    %v53 = vpop.xlane.xlu0 %52
    %v54 = vrcp.pop 32.0
    %v55 = vmul.f32 32.0, %v54
    %v56 = vsub.f32 1.0, %v55
    %v57 = vmul.f32 %v54, %v56
    %v58 = vadd.f32 %v54, %v57
    %vm59 = vweird.f32 %v54
    %v60 = vsel %vm59, %v54, %v58
    %v61 = vmul.f32 %v50, %v60
    %v62 = vmul.f32 %v53, %v60
    %v63 = vsub.f32 %v45, %v61
    %v64 = vsub.f32 %v46, %v62
    %v65 = vmul.f32 %v63, %v63
    %v66 = vmul.f32 %v64, %v64
    %v67 = vsel %vm47, %v65, 0.0
    %68 = vadd.xlane.f32.xlu0 %v67
    %v69 = vpop.xlane.xlu0 %68
    %v70 = vsel %vm47, %v66, 0.0
    %71 = vadd.xlane.f32.xlu0 %v70
    %v72 = vpop.xlane.xlu0 %71
    %v73 = vmul.f32 %v69, %v60
    %v74 = vmul.f32 %v72, %v60
    %v75 = vadd.f32 %v73, 1e-12
    %v76 = vadd.f32 %v74, 1e-12
    %v77 = vrsqrt.pop %v75
    %v78 = vmul.f32 %v77, %v75
    %v79 = vmul.f32 %v78, %v77
    %v80 = vmul.f32 0.5, %v79
    %v81 = vsub.f32 1.5, %v80
    %v82 = vmul.f32 %v77, %v81
    %vm83 = vweird.f32 %v75
    %vm84 = vweird.f32 %v77
    %vm85 = vmor %vm83, %vm84
    %v86 = vsel %vm85, %v77, %v82
    %v87 = vrsqrt.pop %v76
    %v88 = vmul.f32 %v87, %v76
    %v89 = vmul.f32 %v88, %v87
    %v90 = vmul.f32 0.5, %v89
    %v91 = vsub.f32 1.5, %v90
    %v92 = vmul.f32 %v87, %v91
    %vm93 = vweird.f32 %v76
    %vm94 = vweird.f32 %v87
    %vm95 = vmor %vm93, %vm94
    %v96 = vsel %vm95, %v87, %v92
    %v97 = vmul.f32 %v63, %v86
    %v98 = vmul.f32 %v64, %v96
    %v99 = vld [vmem:[#allocation5] sm:$0x1]
    %v101 = vperm.slane %v99, 0
    %v103 = vmul.f32 %v97, %v101
    %v104 = vmul.f32 %v98, %v101
    %v105 = vld [vmem:[%s2] sm:$0x1]
    %v107 = vperm.slane %v105, 0
    %v109 = vadd.f32 %v103, %v107
    %v110 = vadd.f32 %v104, %v107
    %v111 = vpack.c.bf16 %v109, %v109
    %v112 = vpack.c.bf16 %v110, %v110
    %vm113 = vcmask 257024
    %114 = vst.msk [vmem:[#allocation7] sm:$0xf] %vm113, %v111
    %115 = vst.msk [vmem:[#allocation7 + $0x4] sm:$0xf] %vm113, %v112
    // Predicated region
    $region22: #{tpu_custom_call.1} parent=1 // pred_check
      _
    $region23: #{tpu_custom_call.1} parent=1 // pred_check_branch
      %117 = sbr.rel (0) target = $region25
    $region24: #{tpu_custom_call.1} parent=1 // pred_region
      %119 = vsyncadd [#allocation4], 0
      %s120 = sshll.u32 [#allocation7], 4
      %s121 = int_to_ptr.vmem [resolvable:$true] %s120
      %s122 = sshll.u32 %s3, 4
      %s123 = int_to_ptr.hbm [resolvable:$true] %s122
      %128 = dma.vmem_to_hbm [thread:$0]  %s121, 128, %s123, [#allocation4], 64, 64, 4
    $region25: #{tpu_custom_call.1} parent=1 // pred_fallthru
      _
    // Predicated region
    $region26: #{tpu_custom_call.1} parent=1 // pred_check
      _
    $region27: #{tpu_custom_call.1} parent=1 // pred_check_branch
      %130 = sbr.rel (0) target = $region29
    $region28: #{tpu_custom_call.1} parent=1 // pred_region
      %132 = dma.done [#allocation4], 128
    $region29: #{tpu_custom_call.1} parent=1 // pred_fallthru
      _
    %133 = vsyncpa [#allocation3], 1
    %134 = vsyncpa [#allocation6], 1
    %135 = vsyncpa [#allocation4], 1

</llo_original>
